<compile_context>
chip_gen: v5e
topology: v5e:2x2
jax: 0.10.0
libtpu: 0.0.40
codegen_flags: <defaults>
</compile_context>

<pallas_src>
import jax
import jax.numpy as jnp
from jax.experimental import pallas as pl
from jax.experimental.pallas import tpu as pltpu


_SQRT_HALF = 0.7071067811865476


def _erf(x):
    # Abramowitz & Stegun 7.1.26 rational approximation of erf, |err| < 1.5e-7.
    # Uses only mul/add/div/exp/where, all of which lower cleanly in Mosaic.
    p = 0.3275911
    a1, a2, a3, a4, a5 = 0.254829592, -0.284496736, 1.421413741, -1.453152027, 1.061405429
    sgn = jnp.where(x >= 0.0, 1.0, -1.0)
    ax = jnp.abs(x)
    t = 1.0 / (1.0 + p * ax)
    poly = ((((a5 * t + a4) * t + a3) * t + a2) * t + a1) * t
    return sgn * (1.0 - poly * jnp.exp(-ax * ax))


def _gelu(x):
    # Exact (erf-based) GELU == PyTorch nn.GELU(approximate='none') up to ~1e-7.
    return 0.5 * x * (1.0 + _erf(x * _SQRT_HALF))


def _round_up(n, m):
    return ((n + m - 1) // m) * m


def _vmem_limit(block_bytes):
    # Explicit scoped-VMEM budget: 2x headroom over the estimate, floor 16 MiB,
    # capped at 48 MiB so the same kernel stays under v7x's 64 MiB physical VMEM
    # (v5e / v6e have 128 MiB and are unaffected).
    return int(min(max(2 * block_bytes, 16 * 1024 * 1024), 48 * 1024 * 1024))


# ----------------------------------------------------------------------------------------
# One HeteroConv(GCN x 2 edge types, aggr='sum') layer + Identity norm + GELU, fused.
# ----------------------------------------------------------------------------------------
def _hetero_gcn_layer_kernel(a1_ref, a2_ref, x_ref, w1_ref, b1_ref, w2_ref, b2_ref, o_ref):
    """out_tile = GELU( A1[tile] @ X @ W1 + b1 + A2[tile] @ X @ W2 + b2 )."""
    x = x_ref[...]  # (Np, Din) in storage dtype; fed straight to the MXU (no f32 upcast).

    # Aggregate first: (tile, Np) @ (Np, Din) -> per-tile work, nothing recomputed across tiles.
    agg1 = jnp.dot(a1_ref[...], x, preferred_element_type=jnp.float32)
    agg2 = jnp.dot(a2_ref[...], x, preferred_element_type=jnp.float32)

    # Per-edge-type linear transform, f32 accumulation (MXU operands in the weights' dtype).
    h = jnp.dot(agg1.astype(w1_ref.dtype), w1_ref[...], preferred_element_type=jnp.float32)
    h = h + jnp.dot(agg2.astype(w2_ref.dtype), w2_ref[...], preferred_element_type=jnp.float32)
    h = h + b1_ref[...].astype(jnp.float32) + b2_ref[...].astype(jnp.float32)

    # norm=None -> Identity; activation = GELU (applied after every layer in HeteroGnn.forward).
    o_ref[...] = _gelu(h).astype(o_ref.dtype)


def hetero_gcn_layer(a1, a2, x, w1, b1, w2, b2, *, row_tile=256):
    n_pad, din = x.shape
    hid = w1.shape[1]
    assert a1.shape == (n_pad, n_pad) and a2.shape == (n_pad, n_pad)
    assert n_pad % row_tile == 0 and row_tile % 8 == 0
    grid = (n_pad // row_tile,)

    itemsize = jnp.dtype(x.dtype).itemsize
    block_bytes = (
        2 * (2 * row_tile * n_pad + row_tile * hid)          # double-buffered A tiles + out tile
        + 2 * (n_pad * din + 2 * (din * hid + hid))          # constant-index X / W / b blocks
    ) * itemsize

    return pl.pallas_call(
        _hetero_gcn_layer_kernel,
        out_shape=jax.ShapeDtypeStruct((n_pad, hid), x.dtype),
        grid=grid,
        in_specs=[
            pl.BlockSpec((row_tile, n_pad), lambda i: (i, 0)),  # A1 row tile (pipelined)
            pl.BlockSpec((row_tile, n_pad), lambda i: (i, 0)),  # A2 row tile (pipelined)
            pl.BlockSpec((n_pad, din), lambda i: (0, 0)),       # X (constant block, fetched once)
            pl.BlockSpec((din, hid), lambda i: (0, 0)),         # W1
            pl.BlockSpec((1, hid), lambda i: (0, 0)),           # b1
            pl.BlockSpec((din, hid), lambda i: (0, 0)),         # W2
            pl.BlockSpec((1, hid), lambda i: (0, 0)),           # b2
        ],
        out_specs=pl.BlockSpec((row_tile, hid), lambda i: (i, 0)),
        compiler_params=pltpu.CompilerParams(
            dimension_semantics=("parallel",),                  # megacore-shardable on v7x
            vmem_limit_bytes=_vmem_limit(block_bytes),
        ),
    )(a1, a2, x, w1, b1, w2, b2)


def hetero_gnn_forward(x_pad, adjs_pad, layer_params, *, row_tile=256):
    """HeteroGnn.forward: stack of fused HeteroConv(GCN, aggr='sum') + Identity + GELU layers."""
    a1, a2 = adjs_pad
    h = x_pad
    for (w1, b1, w2, b2) in layer_params:
        h = hetero_gcn_layer(a1, a2, h, w1, b1, w2, b2, row_tile=row_tile)
    return h


# ----------------------------------------------------------------------------------------
# pred_head submodule (built by HeteroGnn with defaults head_num_layers=2, gelu, dropout=0,
# no norm, no residual): Linear(H,H) -> GELU -> Dropout(0) -> Linear(H,1).
# NOTE: HeteroGnn.forward never calls it; provided (and verified) separately.
# ----------------------------------------------------------------------------------------
def _pred_head_kernel(x_ref, w1_ref, b1_ref, w2_ref, b2_ref, o_ref):
    h = jnp.dot(x_ref[...], w1_ref[...], preferred_element_type=jnp.float32)
    h = _gelu(h + b1_ref[...].astype(jnp.float32))
    # Dropout(p=0.0) is the identity in eval mode.
    # Final H->1 layer on the VPU/XLU with a lane-dense (1,H) weight row instead of a
    # width-1 MXU matmul (review feedback: avoids wasting 127/255 MXU output columns).
    w2 = w2_ref[...].astype(jnp.float32)                       # (1, H), broadcasts over rows
    out = jnp.sum(h * w2, axis=-1, keepdims=True) + b2_ref[...].astype(jnp.float32)
    o_ref[...] = out.astype(o_ref.dtype)


def prediction_head(x, w1, b1, w2_row, b2, *, row_tile=256):
    n_pad, hid = x.shape
    assert n_pad % row_tile == 0 and row_tile % 8 == 0
    assert w2_row.shape == (1, hid) and b2.shape == (1, 1)
    grid = (n_pad // row_tile,)

    itemsize = jnp.dtype(x.dtype).itemsize
    block_bytes = (2 * (row_tile * hid + row_tile) + 2 * (hid * hid + 3 * hid + 1)) * itemsize

    return pl.pallas_call(
        _pred_head_kernel,
        out_shape=jax.ShapeDtypeStruct((n_pad, 1), x.dtype),
        grid=grid,
        in_specs=[
            pl.BlockSpec((row_tile, hid), lambda i: (i, 0)),    # activations (pipelined)
            pl.BlockSpec((hid, hid), lambda i: (0, 0)),         # W1 (constant block)
            pl.BlockSpec((1, hid), lambda i: (0, 0)),           # b1
            pl.BlockSpec((1, hid), lambda i: (0, 0)),           # W2 stored lane-dense (1, H)
            pl.BlockSpec((1, 1), lambda i: (0, 0)),             # b2
        ],
        out_specs=pl.BlockSpec((row_tile, 1), lambda i: (i, 0)),
        compiler_params=pltpu.CompilerParams(
            dimension_semantics=("parallel",),
            vmem_limit_bytes=_vmem_limit(block_bytes),
        ),
    )(x, w1, b1, w2_row, b2)


# ----------------------------------------------------------------------------------------
# Pure-JAX references (mirror the PyTorch forward math).
# ----------------------------------------------------------------------------------------
def _gcn_norm_dense(src, dst, num_nodes):
    """Dense D^-1/2 (A + I) D^-1/2 for GCNConv(normalize=True, add_self_loops=True)."""
    a = jnp.zeros((num_nodes, num_nodes), jnp.float32).at[dst, src].set(1.0)
    idx = jnp.arange(num_nodes)
    a = a.at[idx, idx].set(1.0)                     # add_remaining_self_loops
    deg = a.sum(axis=1)                             # in-degree incl. self loop (>= 1)
    d_inv_sqrt = jax.lax.rsqrt(deg)
    return a * d_inv_sqrt[:, None] * d_inv_sqrt[None, :]


def hetero_gnn_forward_ref(x, adjs, layer_params):
    hp = jax.lax.Precision.HIGHEST
    a1, a2 = adjs
    h = x
    for (w1, b1, w2, b2) in layer_params:
        z = (jnp.dot(jnp.dot(a1, h, precision=hp), w1, precision=hp) + b1
             + jnp.dot(jnp.dot(a2, h, precision=hp), w2, precision=hp) + b2)
        h = jax.nn.gelu(z, approximate=False)
    return h


def prediction_head_ref(x, w1, b1, w2_row, b2):
    hp = jax.lax.Precision.HIGHEST
    h = jax.nn.gelu(jnp.dot(x, w1, precision=hp) + b1, approximate=False)
    return jnp.dot(h, w2_row.T, precision=hp) + b2


if __name__ == "__main__":
    # Small HeteroGnn: 60 'gene' nodes, in=16, hidden=32, 2 GCN layers, 2 edge types, GELU.
    N_NODES, IN_CH, HIDDEN, OUT_CH, NUM_LAYERS, N_EDGES = 60, 16, 32, 1, 2, 180
    ROW_TILE = 16                       # multiple of 8; padded grid = 64/16 = 4 tiles (even)

    key = jax.random.PRNGKey(0)
    keys = list(jax.random.split(key, 16))

    x = jax.random.normal(keys[0], (N_NODES, IN_CH), dtype=jnp.float32)

    # Two edge types ('physical_interaction', 'regulatory_interaction') as random edge_index,
    # converted to the dense normalized GCN operator (plain-JAX preprocessing, not the kernel).
    adjs = []
    for i in range(2):
        src = jax.random.randint(keys[1 + 2 * i], (N_EDGES,), 0, N_NODES)
        dst = jax.random.randint(keys[2 + 2 * i], (N_EDGES,), 0, N_NODES)
        adjs.append(_gcn_norm_dense(src, dst, N_NODES))

    def linear_params(k, fan_in, fan_out):
        kw, kb = jax.random.split(k)
        bound = float(1.0 / (fan_in ** 0.5))
        w = jax.random.uniform(kw, (fan_in, fan_out), jnp.float32, -bound, bound)  # == W_pt.T
        b = jax.random.uniform(kb, (1, fan_out), jnp.float32, -bound, bound)
        return w, b

    layer_params = []
    kidx = 5
    for layer in range(NUM_LAYERS):
        fan_in = IN_CH if layer == 0 else HIDDEN
        w1, b1 = linear_params(keys[kidx], fan_in, HIDDEN); kidx += 1
        w2, b2 = linear_params(keys[kidx], fan_in, HIDDEN); kidx += 1
        layer_params.append((w1, b1, w2, b2))

    # Pad node dim to a multiple of the row tile (zero rows/cols => padded nodes are isolated,
    # never contribute to real rows; padded output rows are sliced off).
    n_pad = _round_up(N_NODES, ROW_TILE)
    x_pad = jnp.zeros((n_pad, IN_CH), x.dtype).at[:N_NODES].set(x)
    adjs_pad = tuple(
        jnp.zeros((n_pad, n_pad), a.dtype).at[:N_NODES, :N_NODES].set(a) for a in adjs
    )

    # --- HeteroGnn.forward (what the PyTorch module actually returns) ---------------------
    gnn_out_pad = hetero_gnn_forward(x_pad, adjs_pad, layer_params, row_tile=ROW_TILE)
    gnn_out_pad = jax.block_until_ready(gnn_out_pad)
    gnn_out = gnn_out_pad[:N_NODES]

    gnn_ref = hetero_gnn_forward_ref(x, tuple(adjs), layer_params)
    # Tolerance sized for f32->MXU pass-decomposition differences between the XLA (HIGHEST)
    # reference and Mosaic's default; structural errors (wrong adjacency/bias/GELU) are O(1).
    assert gnn_out.shape == (N_NODES, HIDDEN)
    assert jnp.allclose(gnn_out, gnn_ref, atol=3e-2, rtol=3e-2), (
        f"GNN mismatch, max|diff|={float(jnp.max(jnp.abs(gnn_out - gnn_ref)))}")

    # --- pred_head submodule (not invoked by HeteroGnn.forward; verified standalone) ------
    hw1, hb1 = linear_params(keys[kidx], HIDDEN, HIDDEN); kidx += 1
    hw2, hb2 = linear_params(keys[kidx], HIDDEN, OUT_CH); kidx += 1
    hw2_row = hw2.T                                    # lane-dense (1, H) == Linear(H,1).weight
    head_out_pad = prediction_head(gnn_out_pad, hw1, hb1, hw2_row, hb2, row_tile=ROW_TILE)
    head_out_pad = jax.block_until_ready(head_out_pad)
    head_out = head_out_pad[:N_NODES]

    head_ref = prediction_head_ref(gnn_out, hw1, hb1, hw2_row, hb2)
    assert head_out.shape == (N_NODES, OUT_CH)
    assert jnp.allclose(head_out, head_ref, atol=3e-2, rtol=3e-2), (
        f"head mismatch, max|diff|={float(jnp.max(jnp.abs(head_out - head_ref)))}")

    print("KERNEL_OK")
</pallas_src>

<mosaic_0001>
module attributes {stable_mosaic.version = 11 : i64} {
  func.func @_hetero_gcn_layer_kernel(%arg0: i32, %arg1: memref<16x64xf32, #tpu.memory_space<vmem>>, %arg2: memref<16x64xf32, #tpu.memory_space<vmem>>, %arg3: memref<64x16xf32, #tpu.memory_space<vmem>>, %arg4: memref<16x32xf32, #tpu.memory_space<vmem>>, %arg5: memref<1x32xf32, #tpu.memory_space<vmem>>, %arg6: memref<16x32xf32, #tpu.memory_space<vmem>>, %arg7: memref<1x32xf32, #tpu.memory_space<vmem>>, %arg8: memref<16x32xf32, #tpu.memory_space<vmem>>) attributes {dimension_semantics = [#tpu.dimension_semantics<parallel>], iteration_bounds = array<i64: 4>, scalar_prefetch = 0 : i64, scratch_operands = 0 : i64, tpu.core_type = #tpu.core_type<tc>, window_params = [{transform_indices = @transform_0, window_bounds = array<i64: 16, 64>}, {transform_indices = @transform_1, window_bounds = array<i64: 16, 64>}, {pipeline_mode = #tpu.pipeline_mode<synchronous>, transform_indices = @transform_2, window_bounds = array<i64: 64, 16>}, {pipeline_mode = #tpu.pipeline_mode<synchronous>, transform_indices = @transform_3, window_bounds = array<i64: 16, 32>}, {pipeline_mode = #tpu.pipeline_mode<synchronous>, transform_indices = @transform_4, window_bounds = array<i64: 1, 32>}, {pipeline_mode = #tpu.pipeline_mode<synchronous>, transform_indices = @transform_5, window_bounds = array<i64: 16, 32>}, {pipeline_mode = #tpu.pipeline_mode<synchronous>, transform_indices = @transform_6, window_bounds = array<i64: 1, 32>}, {transform_indices = @transform_7, window_bounds = array<i64: 16, 32>}]} {
    %c0 = arith.constant 0 : index
    %c0_0 = arith.constant 0 : index
    %0 = vector.load %arg3[%c0, %c0_0] : memref<64x16xf32, #tpu.memory_space<vmem>>, vector<64x16xf32>
    %c0_1 = arith.constant 0 : index
    %c0_2 = arith.constant 0 : index
    %1 = vector.load %arg1[%c0_1, %c0_2] : memref<16x64xf32, #tpu.memory_space<vmem>>, vector<16x64xf32>
    %cst = arith.constant dense<0.000000e+00> : vector<16x16xf32>
    %2 = tpu.matmul %1, %0, %cst {dimension_numbers = #tpu.dot_dimension_numbers<[1], [0], [0], [1], [0, 0, 1, 1], [], []>} : vector<16x64xf32>, vector<64x16xf32>, vector<16x16xf32> -> vector<16x16xf32>
    %c0_3 = arith.constant 0 : index
    %c0_4 = arith.constant 0 : index
    %3 = vector.load %arg2[%c0_3, %c0_4] : memref<16x64xf32, #tpu.memory_space<vmem>>, vector<16x64xf32>
    %cst_5 = arith.constant dense<0.000000e+00> : vector<16x16xf32>
    %4 = tpu.matmul %3, %0, %cst_5 {dimension_numbers = #tpu.dot_dimension_numbers<[1], [0], [0], [1], [0, 0, 1, 1], [], []>} : vector<16x64xf32>, vector<64x16xf32>, vector<16x16xf32> -> vector<16x16xf32>
    %c0_6 = arith.constant 0 : index
    %c0_7 = arith.constant 0 : index
    %5 = vector.load %arg4[%c0_6, %c0_7] : memref<16x32xf32, #tpu.memory_space<vmem>>, vector<16x32xf32>
    %cst_8 = arith.constant dense<0.000000e+00> : vector<16x32xf32>
    %6 = tpu.matmul %2, %5, %cst_8 {dimension_numbers = #tpu.dot_dimension_numbers<[1], [0], [0], [1], [0, 0, 1, 1], [], []>} : vector<16x16xf32>, vector<16x32xf32>, vector<16x32xf32> -> vector<16x32xf32>
    %c0_9 = arith.constant 0 : index
    %c0_10 = arith.constant 0 : index
    %7 = vector.load %arg6[%c0_9, %c0_10] : memref<16x32xf32, #tpu.memory_space<vmem>>, vector<16x32xf32>
    %cst_11 = arith.constant dense<0.000000e+00> : vector<16x32xf32>
    %8 = tpu.matmul %4, %7, %cst_11 {dimension_numbers = #tpu.dot_dimension_numbers<[1], [0], [0], [1], [0, 0, 1, 1], [], []>} : vector<16x16xf32>, vector<16x32xf32>, vector<16x32xf32> -> vector<16x32xf32>
    %9 = arith.addf %6, %8 : vector<16x32xf32>
    %c0_12 = arith.constant 0 : index
    %c0_13 = arith.constant 0 : index
    %10 = vector.load %arg5[%c0_12, %c0_13] : memref<1x32xf32, #tpu.memory_space<vmem>>, vector<1x32xf32>
    %11 = vector.broadcast %10 : vector<1x32xf32> to vector<16x32xf32>
    %12 = arith.addf %9, %11 : vector<16x32xf32>
    %c0_14 = arith.constant 0 : index
    %c0_15 = arith.constant 0 : index
    %13 = vector.load %arg7[%c0_14, %c0_15] : memref<1x32xf32, #tpu.memory_space<vmem>>, vector<1x32xf32>
    %14 = vector.broadcast %13 : vector<1x32xf32> to vector<16x32xf32>
    %15 = arith.addf %12, %14 : vector<16x32xf32>
    %cst_16 = arith.constant 5.000000e-01 : f32
    %16 = vector.broadcast %cst_16 : f32 to vector<16x32xf32>
    %17 = arith.mulf %16, %15 : vector<16x32xf32>
    %cst_17 = arith.constant 0.707106769 : f32
    %18 = vector.broadcast %cst_17 : f32 to vector<16x32xf32>
    %19 = arith.mulf %15, %18 : vector<16x32xf32>
    %cst_18 = arith.constant 0.000000e+00 : f32
    %20 = vector.broadcast %cst_18 : f32 to vector<16x32xf32>
    %21 = arith.cmpf oge, %19, %20 : vector<16x32xf32>
    %cst_19 = arith.constant 1.000000e+00 : f32
    %cst_20 = arith.constant -1.000000e+00 : f32
    %22 = vector.broadcast %cst_19 : f32 to vector<16x32xf32>
    %23 = vector.broadcast %cst_20 : f32 to vector<16x32xf32>
    %24 = arith.select %21, %22, %23 : vector<16x32xi1>, vector<16x32xf32>
    %25 = math.absf %19 : vector<16x32xf32>
    %cst_21 = arith.constant 0.327591091 : f32
    %26 = vector.broadcast %cst_21 : f32 to vector<16x32xf32>
    %27 = arith.mulf %26, %25 : vector<16x32xf32>
    %cst_22 = arith.constant 1.000000e+00 : f32
    %28 = vector.broadcast %cst_22 : f32 to vector<16x32xf32>
    %29 = arith.addf %28, %27 : vector<16x32xf32>
    %cst_23 = arith.constant 1.000000e+00 : f32
    %30 = vector.broadcast %cst_23 : f32 to vector<16x32xf32>
    %31 = arith.divf %30, %29 : vector<16x32xf32>
    %cst_24 = arith.constant 1.06140542 : f32
    %32 = vector.broadcast %cst_24 : f32 to vector<16x32xf32>
    %33 = arith.mulf %32, %31 : vector<16x32xf32>
    %cst_25 = arith.constant -1.45315206 : f32
    %34 = vector.broadcast %cst_25 : f32 to vector<16x32xf32>
    %35 = arith.addf %33, %34 : vector<16x32xf32>
    %36 = arith.mulf %35, %31 : vector<16x32xf32>
    %cst_26 = arith.constant 1.42141378 : f32
    %37 = vector.broadcast %cst_26 : f32 to vector<16x32xf32>
    %38 = arith.addf %36, %37 : vector<16x32xf32>
    %39 = arith.mulf %38, %31 : vector<16x32xf32>
    %cst_27 = arith.constant -0.284496725 : f32
    %40 = vector.broadcast %cst_27 : f32 to vector<16x32xf32>
    %41 = arith.addf %39, %40 : vector<16x32xf32>
    %42 = arith.mulf %41, %31 : vector<16x32xf32>
    %cst_28 = arith.constant 0.254829586 : f32
    %43 = vector.broadcast %cst_28 : f32 to vector<16x32xf32>
    %44 = arith.addf %42, %43 : vector<16x32xf32>
    %45 = arith.mulf %44, %31 : vector<16x32xf32>
    %cst_29 = arith.constant 0.000000e+00 : f32
    %46 = vector.broadcast %cst_29 : f32 to vector<16x32xf32>
    %47 = arith.subf %46, %25 : vector<16x32xf32>
    %48 = arith.mulf %47, %25 : vector<16x32xf32>
    %49 = math.exp %48 : vector<16x32xf32>
    %50 = arith.mulf %45, %49 : vector<16x32xf32>
    %cst_30 = arith.constant 1.000000e+00 : f32
    %51 = vector.broadcast %cst_30 : f32 to vector<16x32xf32>
    %52 = arith.subf %51, %50 : vector<16x32xf32>
    %53 = arith.mulf %24, %52 : vector<16x32xf32>
    %cst_31 = arith.constant 1.000000e+00 : f32
    %54 = vector.broadcast %cst_31 : f32 to vector<16x32xf32>
    %55 = arith.addf %54, %53 : vector<16x32xf32>
    %56 = arith.mulf %17, %55 : vector<16x32xf32>
    %c0_32 = arith.constant 0 : index
    %c0_33 = arith.constant 0 : index
    %57 = vector.load %arg8[%c0_32, %c0_33] : memref<16x32xf32, #tpu.memory_space<vmem>>, vector<16x32xf32>
    tpu.vector_store %arg8[%c0_32, %c0_33], %56 {strides = array<i32>} : memref<16x32xf32, #tpu.memory_space<vmem>>, vector<16x32xf32>,
    return
  }
  func.func @transform_0(%arg0: i32) -> (i32, i32) {
    %c0_i32 = arith.constant 0 : i32
    %c0_i32_0 = arith.constant 0 : i32
    return %arg0, %c0_i32 : i32, i32
  }
  func.func @transform_1(%arg0: i32) -> (i32, i32) {
    %c0_i32 = arith.constant 0 : i32
    %c0_i32_0 = arith.constant 0 : i32
    return %arg0, %c0_i32 : i32, i32
  }
  func.func @transform_2(%arg0: i32) -> (i32, i32) {
    %c0_i32 = arith.constant 0 : i32
    %c0_i32_0 = arith.constant 0 : i32
    %c0_i32_1 = arith.constant 0 : i32
    return %c0_i32, %c0_i32_0 : i32, i32
  }
  func.func @transform_3(%arg0: i32) -> (i32, i32) {
    %c0_i32 = arith.constant 0 : i32
    %c0_i32_0 = arith.constant 0 : i32
    %c0_i32_1 = arith.constant 0 : i32
    return %c0_i32, %c0_i32_0 : i32, i32
  }
  func.func @transform_4(%arg0: i32) -> (i32, i32) {
    %c0_i32 = arith.constant 0 : i32
    %c0_i32_0 = arith.constant 0 : i32
    %c0_i32_1 = arith.constant 0 : i32
    return %c0_i32, %c0_i32_0 : i32, i32
  }
  func.func @transform_5(%arg0: i32) -> (i32, i32) {
    %c0_i32 = arith.constant 0 : i32
    %c0_i32_0 = arith.constant 0 : i32
    %c0_i32_1 = arith.constant 0 : i32
    return %c0_i32, %c0_i32_0 : i32, i32
  }
  func.func @transform_6(%arg0: i32) -> (i32, i32) {
    %c0_i32 = arith.constant 0 : i32
    %c0_i32_0 = arith.constant 0 : i32
    %c0_i32_1 = arith.constant 0 : i32
    return %c0_i32, %c0_i32_0 : i32, i32
  }
  func.func @transform_7(%arg0: i32) -> (i32, i32) {
    %c0_i32 = arith.constant 0 : i32
    %c0_i32_0 = arith.constant 0 : i32
    return %arg0, %c0_i32 : i32, i32
  }
}

</mosaic_0001>

<llo_original>
// kernel: tpu_custom_call.1
$region0: #{tpu_custom_call.1}
  #allocation0 [shape = 'u32[]', space=smem, size = 0x4, offset = 0x4, fixed_abs, tag = 'smem constant byte address 0x4 - core index']
  #allocation1 [shape = 'u32[72,128]{1,0:T(1,128)}', space=vmem, size = 0x9000, scoped, tag = 'internal scratch']
  %s0 = inlined_call_operand.vmem [shape: f32[64,64], index: 0, kind: input, shape index: {}]
  %s1 = inlined_call_operand.hbm [shape: f32[64,64], index: 1, kind: input, shape index: {}]
  %s2 = inlined_call_operand.vmem [shape: f32[64,16], index: 2, kind: input, shape index: {}]
  %s3 = inlined_call_operand.vmem [shape: f32[16,32], index: 3, kind: input, shape index: {}]
  %s4 = inlined_call_operand.vmem [shape: f32[1,32], index: 4, kind: input, shape index: {}]
  %s5 = inlined_call_operand.hbm [shape: f32[16,32], index: 5, kind: input, shape index: {}]
  %s6 = inlined_call_operand.vmem [shape: f32[1,32], index: 6, kind: input, shape index: {}]
  %s7 = inlined_call_operand.vmem [shape: f32[64,32], index: 7, kind: output, shape index: {}]
  %s8 = sld [smem:[#allocation0]]
  $region69: #{tpu_custom_call.1} parent=0
    _
  %s10 = ssub.s32 1, %s8
  %s11 = scalar_select 0, %s10, %s8
  $region1: #{tpu_custom_call.1} parent=0
    #allocation2 [shape = 'u8[16384]{0}', space=vmem, size = 0x4000, scoped, tag = 'input window, operand 1']
    #allocation3 [shape = 's32[2]{0}', space=sflag, size = 0x8, scoped, tag = 'scoped memory for tpu_custom_call.1']
    #allocation4 [shape = 'u8[8192]{0}', space=vmem, size = 0x2000, scoped, tag = 'input window, operand 5, single buffered']
    #allocation5 [shape = 's32[1]{0}', space=sflag, size = 0x4, scoped, tag = 'scoped memory for tpu_custom_call.1']
    %12 = vsyncpa [#allocation3], 0
    %s13 = scalar_lea.sflag [#allocation3], 1
    %14 = vsyncpa %s13, 0
    %15 = vsyncpa [#allocation5], 0
    loop: start=0, step=1, limit=6
    $region2: #{tpu_custom_call.1} parent=1 // loop_pre_header
      _
    $region3: #{tpu_custom_call.1} parent=1 // loop_header
      %s17 = sphi 0, %s21
      %p18 = scmp.ge.s32.totalorder %s17, 6
      %s27 = sphi 0, %s29
      %s30 = sphi 0, %s27
      %s31 = sphi 0, %s30
      %s47 = sphi 0, %s31
      %s53 = sphi 0, %s55
      %s56 = sphi 0, %s53
      %s57 = sphi 0, %s56
      %s73 = sphi 0, %s57
      %s77 = sphi 0, %s77
      %s79 = sphi 0, %s77
      %s80 = sphi 0, %s79
      %s94 = sphi 0, %s80
      %s98 = sphi 0, %s98
      %s100 = sphi 0, %s98
      %s101 = sphi 0, %s100
      %s115 = sphi 0, %s101
      %s119 = sphi 0, %s119
      %s121 = sphi 0, %s119
      %s122 = sphi 0, %s121
      %s136 = sphi 0, %s122
      %s140 = sphi 0, %s140
      %s142 = sphi 0, %s140
      %s143 = sphi 0, %s142
      %s157 = sphi 0, %s143
      %s161 = sphi 0, %s161
      %s163 = sphi 0, %s161
      %s164 = sphi 0, %s163
      %s178 = sphi 0, %s164
      %s184 = sphi 0, %s186
      %s187 = sphi 0, %s184
      %s188 = sphi 0, %s187
      %s204 = sphi 0, %s188
    $region4: #{tpu_custom_call.1} parent=1 // loop_header_branch
      %20 = sbr.rel (%p18) target = $region8
    $region5: #{tpu_custom_call.1} parent=1 // loop_body
      %s22 = ssub.s32 %s17, 1
      %s23 = ssub.s32 %s17, 2
      %s24 = sadd.s32 %s17, 1
      %s25 = ssub.s32 %s17, %s24
      %p26 = scmp.eq.s32.totalorder %s25, 0
      %s28 = sadd.s32 %s27, 1
      %s29 = scalar_select %p26, %s27, %s28
      %p32 = pneg %p26
      %p33 = scmp.eq.s32.totalorder %s17, 3
      %p34 = por %p32, %p33
      %p35 = scmp.ne.s32.totalorder %s27, %s30
      %p36 = scmp.eq.s32.totalorder %s17, 0
      %p37 = por %p35, %p36
      %p38 = scmp.ne.s32.totalorder %s27, %s30
      %p39 = scmp.eq.s32.totalorder %s22, 3
      %p40 = por %p38, %p39
      %p41 = scmp.ne.s32.totalorder %s30, %s31
      %p42 = scmp.eq.s32.totalorder %s22, 0
      %p43 = por %p41, %p42
      %p44 = scmp.ne.s32.totalorder %s30, %s31
      %p45 = scmp.eq.s32.totalorder %s23, 3
      %p46 = por %p44, %p45
      %p48 = scmp.ne.s32.totalorder %s31, %s47
      %p49 = scmp.eq.s32.totalorder %s23, 0
      %p50 = por %p48, %p49
      %s51 = ssub.s32 %s17, %s24
      %p52 = scmp.eq.s32.totalorder %s51, 0
      %s54 = sadd.s32 %s53, 1
      %s55 = scalar_select %p52, %s53, %s54
      %p58 = pneg %p52
      %p59 = scmp.eq.s32.totalorder %s17, 3
      %p60 = por %p58, %p59
      %p61 = scmp.ne.s32.totalorder %s53, %s56
      %p62 = scmp.eq.s32.totalorder %s17, 0
      %p63 = por %p61, %p62
      %p64 = scmp.ne.s32.totalorder %s53, %s56
      %p65 = scmp.eq.s32.totalorder %s22, 3
      %p66 = por %p64, %p65
      %p67 = scmp.ne.s32.totalorder %s56, %s57
      %p68 = scmp.eq.s32.totalorder %s22, 0
      %p69 = por %p67, %p68
      %p70 = scmp.ne.s32.totalorder %s56, %s57
      %p71 = scmp.eq.s32.totalorder %s23, 3
      %p72 = por %p70, %p71
      %p74 = scmp.ne.s32.totalorder %s57, %s73
      %p75 = scmp.eq.s32.totalorder %s23, 0
      %p76 = por %p74, %p75
      %s78 = sadd.s32 %s77, 1
      %p81 = scmp.eq.s32.totalorder %s17, 3
      %p82 = scmp.ne.s32.totalorder %s77, %s79
      %p83 = scmp.eq.s32.totalorder %s17, 0
      %p84 = por %p82, %p83
      %p85 = scmp.ne.s32.totalorder %s77, %s79
      %p86 = scmp.eq.s32.totalorder %s22, 3
      %p87 = por %p85, %p86
      %p88 = scmp.ne.s32.totalorder %s79, %s80
      %p89 = scmp.eq.s32.totalorder %s22, 0
      %p90 = por %p88, %p89
      %p91 = scmp.ne.s32.totalorder %s79, %s80
      %p92 = scmp.eq.s32.totalorder %s23, 3
      %p93 = por %p91, %p92
      %p95 = scmp.ne.s32.totalorder %s80, %s94
      %p96 = scmp.eq.s32.totalorder %s23, 0
      %p97 = por %p95, %p96
      %s99 = sadd.s32 %s98, 1
      %p102 = scmp.eq.s32.totalorder %s17, 3
      %p103 = scmp.ne.s32.totalorder %s98, %s100
      %p104 = scmp.eq.s32.totalorder %s17, 0
      %p105 = por %p103, %p104
      %p106 = scmp.ne.s32.totalorder %s98, %s100
      %p107 = scmp.eq.s32.totalorder %s22, 3
      %p108 = por %p106, %p107
      %p109 = scmp.ne.s32.totalorder %s100, %s101
      %p110 = scmp.eq.s32.totalorder %s22, 0
      %p111 = por %p109, %p110
      %p112 = scmp.ne.s32.totalorder %s100, %s101
      %p113 = scmp.eq.s32.totalorder %s23, 3
      %p114 = por %p112, %p113
      %p116 = scmp.ne.s32.totalorder %s101, %s115
      %p117 = scmp.eq.s32.totalorder %s23, 0
      %p118 = por %p116, %p117
      %s120 = sadd.s32 %s119, 1
      %p123 = scmp.eq.s32.totalorder %s17, 3
      %p124 = scmp.ne.s32.totalorder %s119, %s121
      %p125 = scmp.eq.s32.totalorder %s17, 0
      %p126 = por %p124, %p125
      %p127 = scmp.ne.s32.totalorder %s119, %s121
      %p128 = scmp.eq.s32.totalorder %s22, 3
      %p129 = por %p127, %p128
      %p130 = scmp.ne.s32.totalorder %s121, %s122
      %p131 = scmp.eq.s32.totalorder %s22, 0
      %p132 = por %p130, %p131
      %p133 = scmp.ne.s32.totalorder %s121, %s122
      %p134 = scmp.eq.s32.totalorder %s23, 3
      %p135 = por %p133, %p134
      %p137 = scmp.ne.s32.totalorder %s122, %s136
      %p138 = scmp.eq.s32.totalorder %s23, 0
      %p139 = por %p137, %p138
      %s141 = sadd.s32 %s140, 1
      %p144 = scmp.eq.s32.totalorder %s17, 3
      %p145 = scmp.ne.s32.totalorder %s140, %s142
      %p146 = scmp.eq.s32.totalorder %s17, 0
      %p147 = por %p145, %p146
      %p148 = scmp.ne.s32.totalorder %s140, %s142
      %p149 = scmp.eq.s32.totalorder %s22, 3
      %p150 = por %p148, %p149
      %p151 = scmp.ne.s32.totalorder %s142, %s143
      %p152 = scmp.eq.s32.totalorder %s22, 0
      %p153 = por %p151, %p152
      %p154 = scmp.ne.s32.totalorder %s142, %s143
      %p155 = scmp.eq.s32.totalorder %s23, 3
      %p156 = por %p154, %p155
      %p158 = scmp.ne.s32.totalorder %s143, %s157
      %p159 = scmp.eq.s32.totalorder %s23, 0
      %p160 = por %p158, %p159
      %s162 = sadd.s32 %s161, 1
      %p165 = scmp.eq.s32.totalorder %s17, 3
      %p166 = scmp.ne.s32.totalorder %s161, %s163
      %p167 = scmp.eq.s32.totalorder %s17, 0
      %p168 = por %p166, %p167
      %p169 = scmp.ne.s32.totalorder %s161, %s163
      %p170 = scmp.eq.s32.totalorder %s22, 3
      %p171 = por %p169, %p170
      %p172 = scmp.ne.s32.totalorder %s163, %s164
      %p173 = scmp.eq.s32.totalorder %s22, 0
      %p174 = por %p172, %p173
      %p175 = scmp.ne.s32.totalorder %s163, %s164
      %p176 = scmp.eq.s32.totalorder %s23, 3
      %p177 = por %p175, %p176
      %p179 = scmp.ne.s32.totalorder %s164, %s178
      %p180 = scmp.eq.s32.totalorder %s23, 0
      %p181 = por %p179, %p180
      %s182 = ssub.s32 %s17, %s24
      %p183 = scmp.eq.s32.totalorder %s182, 0
      %s185 = sadd.s32 %s184, 1
      %s186 = scalar_select %p183, %s184, %s185
      %p189 = pneg %p183
      %p190 = scmp.eq.s32.totalorder %s17, 3
      %p191 = por %p189, %p190
      %p192 = scmp.ne.s32.totalorder %s184, %s187
      %p193 = scmp.eq.s32.totalorder %s17, 0
      %p194 = por %p192, %p193
      %p195 = scmp.ne.s32.totalorder %s184, %s187
      %p196 = scmp.eq.s32.totalorder %s22, 3
      %p197 = por %p195, %p196
      %p198 = scmp.ne.s32.totalorder %s187, %s188
      %p199 = scmp.eq.s32.totalorder %s22, 0
      %p200 = por %p198, %p199
      %p201 = scmp.ne.s32.totalorder %s187, %s188
      %p202 = scmp.eq.s32.totalorder %s23, 3
      %p203 = por %p201, %p202
      %p205 = scmp.ne.s32.totalorder %s188, %s204
      %p206 = scmp.eq.s32.totalorder %s23, 0
      %p207 = por %p205, %p206
      %p208 = scmp.le.s32.totalorder 1, %s17
      %p209 = scmp.lt.s32.totalorder %s17, 5
      %p210 = pnand %p208, %p209
      %p211 = pneg %p210
      // Predicated region
      $region9: #{tpu_custom_call.1} parent=5 // pred_check
        _
      $region10: #{tpu_custom_call.1} parent=5 // pred_check_branch
        %213 = sbr.rel (%p210) target = $region12
      $region11: #{tpu_custom_call.1} parent=5 // pred_region
        %s214 = ssub.s32 %s17, 1
        // Predicated region
        $region13: #{tpu_custom_call.1} parent=11 // pred_check
          %p215 = pneg %p90
        $region14: #{tpu_custom_call.1} parent=11 // pred_check_branch
          %217 = sbr.rel (%p215) target = $region16
        $region15: #{tpu_custom_call.1} parent=11 // pred_region
          _
        $region16: #{tpu_custom_call.1} parent=11 // pred_fallthru
          _
        // Predicated region
        $region17: #{tpu_custom_call.1} parent=11 // pred_check
          %p218 = pneg %p111
        $region18: #{tpu_custom_call.1} parent=11 // pred_check_branch
          %220 = sbr.rel (%p218) target = $region20
        $region19: #{tpu_custom_call.1} parent=11 // pred_region
          _
        $region20: #{tpu_custom_call.1} parent=11 // pred_fallthru
          _
        // Predicated region
        $region21: #{tpu_custom_call.1} parent=11 // pred_check
          %p221 = pneg %p132
        $region22: #{tpu_custom_call.1} parent=11 // pred_check_branch
          %223 = sbr.rel (%p221) target = $region24
        $region23: #{tpu_custom_call.1} parent=11 // pred_region
          _
        $region24: #{tpu_custom_call.1} parent=11 // pred_fallthru
          _
        // Predicated region
        $region25: #{tpu_custom_call.1} parent=11 // pred_check
          %p224 = pneg %p153
        $region26: #{tpu_custom_call.1} parent=11 // pred_check_branch
          %226 = sbr.rel (%p224) target = $region28
        $region27: #{tpu_custom_call.1} parent=11 // pred_region
          %228 = vsyncadd [#allocation5], 0
          %s229 = sshll.u32 %s5, 4
          %s230 = int_to_ptr.hbm [resolvable:$true] %s229
          %s231 = sshll.u32 [#allocation4], 4
          %s232 = int_to_ptr.vmem [resolvable:$true] %s231
          %237 = dma.hbm_to_vmem [thread:$0]  %s230, 256, %s232, [#allocation5], 128, 128, 8
        $region28: #{tpu_custom_call.1} parent=11 // pred_fallthru
          _
        // Predicated region
        $region29: #{tpu_custom_call.1} parent=11 // pred_check
          %p238 = pneg %p174
        $region30: #{tpu_custom_call.1} parent=11 // pred_check_branch
          %240 = sbr.rel (%p238) target = $region32
        $region31: #{tpu_custom_call.1} parent=11 // pred_region
          _
        $region32: #{tpu_custom_call.1} parent=11 // pred_fallthru
          _
      $region12: #{tpu_custom_call.1} parent=5 // pred_fallthru
        _
      %p241 = scmp.lt.s32.totalorder %s17, 4
      // Predicated region
      $region33: #{tpu_custom_call.1} parent=5 // pred_check
        %p242 = pneg %p241
      $region34: #{tpu_custom_call.1} parent=5 // pred_check_branch
        %244 = sbr.rel (%p242) target = $region36
      $region35: #{tpu_custom_call.1} parent=5 // pred_region
        // Predicated region
        $region37: #{tpu_custom_call.1} parent=35 // pred_check
          %p245 = pneg %p37
        $region38: #{tpu_custom_call.1} parent=35 // pred_check_branch
          %247 = sbr.rel (%p245) target = $region40
        $region39: #{tpu_custom_call.1} parent=35 // pred_region
          %s248 = smul.u32 2, %s17
          %p249 = scmp.lt.s32.totalorder %s248, 7
          %s250 = scalar_select %p249, %s248, 7
          %s251 = smul.addr %s250, 8
          %s252 = scalar_lea.vmem %s0, %s251
          %s253 = smul.u32 2, %s17
        $region40: #{tpu_custom_call.1} parent=35 // pred_fallthru
          _
        // Predicated region
        $region41: #{tpu_custom_call.1} parent=35 // pred_check
          %p254 = pneg %p63
        $region42: #{tpu_custom_call.1} parent=35 // pred_check_branch
          %256 = sbr.rel (%p254) target = $region44
        $region43: #{tpu_custom_call.1} parent=35 // pred_region
          %s257 = sand.u32 %s53, 1
          %s258 = scalar_lea.sflag [#allocation3], %s257
          %s259 = sand.u32 %s53, 1
          %s260 = smul.addr %s259, 16
          %s261 = scalar_lea.vmem [#allocation2], %s260
          %s262 = smul.u32 2, %s17
          %264 = vsyncadd %s258, 0
          %s265 = smul.addr %s262, 8
          %s266 = scalar_lea.hbm %s1, %s265
          %s267 = sshll.u32 %s266, 4
          %s268 = int_to_ptr.hbm [resolvable:$true] %s267
          %s269 = sshll.u32 %s261, 4
          %s270 = int_to_ptr.vmem [resolvable:$true] %s269
          %275 = dma.hbm_to_vmem [thread:$0]  %s268, 256, %s270, %s258, 128, 128, 8
        $region44: #{tpu_custom_call.1} parent=35 // pred_fallthru
          _
      $region36: #{tpu_custom_call.1} parent=5 // pred_fallthru
        _
      %p276 = scmp.le.s32.totalorder 1, %s17
      %p277 = scmp.lt.s32.totalorder %s17, 5
      %p278 = pnand %p276, %p277
      %p279 = pneg %p278
      // Predicated region
      $region45: #{tpu_custom_call.1} parent=5 // pred_check
        _
      $region46: #{tpu_custom_call.1} parent=5 // pred_check_branch
        %281 = sbr.rel (%p278) target = $region48
      $region47: #{tpu_custom_call.1} parent=5 // pred_region
        %s282 = ssub.s32 %s17, 1
        %s283 = sand.u32 %s56, 1
        %s284 = scalar_lea.sflag [#allocation3], %s283
        %s285 = sand.u32 %s56, 1
        %s286 = smul.addr %s285, 16
        %s287 = scalar_lea.vmem [#allocation2], %s286
        // Predicated region
        $region49: #{tpu_custom_call.1} parent=47 // pred_check
          %p288 = pneg %p69
        $region50: #{tpu_custom_call.1} parent=47 // pred_check_branch
          %290 = sbr.rel (%p288) target = $region52
        $region51: #{tpu_custom_call.1} parent=47 // pred_region
          %292 = dma.done %s284, 256
        $region52: #{tpu_custom_call.1} parent=47 // pred_fallthru
          _
        // Predicated region
        $region53: #{tpu_custom_call.1} parent=47 // pred_check
          %p293 = pneg %p153
        $region54: #{tpu_custom_call.1} parent=47 // pred_check_branch
          %295 = sbr.rel (%p293) target = $region56
        $region55: #{tpu_custom_call.1} parent=47 // pred_region
          %297 = dma.done [#allocation5], 256
        $region56: #{tpu_custom_call.1} parent=47 // pred_fallthru
          _
        %s298 = smul.u32 2, %s22
        %p299 = scmp.lt.s32.totalorder %s298, 7
        %s300 = scalar_select %p299, %s298, 7
        %s301 = smul.addr %s300, 8
        %s302 = scalar_lea.vmem %s0, %s301
        %p303 = pneg %p43
        %p304 = pneg %p40
        %s305 = sand.u32 %s56, 1
        %s306 = scalar_lea.sflag [#allocation3], %s305
        %s307 = sand.u32 %s56, 1
        %s308 = smul.addr %s307, 16
        %s309 = scalar_lea.vmem [#allocation2], %s308
        %p310 = pneg %p69
        %p311 = pneg %p66
        %p312 = pneg %p90
        %p313 = pneg %p87
        %p314 = pneg %p111
        %p315 = pneg %p108
        %p316 = pneg %p132
        %p317 = pneg %p129
        %p318 = pneg %p153
        %p319 = pneg %p150
        %p320 = pneg %p174
        %p321 = pneg %p171
        %p322 = pneg %p200
        %p323 = pneg %p197
        %s324 = smul.u32 2, %s22
        %p325 = scmp.lt.s32.totalorder %s324, 7
        %s326 = scalar_select %p325, %s324, 7
        %s327 = smul.addr %s326, 8
        %s328 = scalar_lea.vmem %s7, %s327
        %s329 = smul.u32 2, %s22
        %p330 = scmp.lt.s32.totalorder %s329, 7
        %s331 = scalar_select %p330, %s329, 7
        %s332 = smul.addr %s331, 8
        %s333 = scalar_lea.vmem %s0, %s332
        %s334 = smul.u32 2, %s22
        %s335 = smul.u32 2, %s22
        %s336 = smul.u32 2, %s22
        %p337 = scmp.lt.s32.totalorder %s336, 7
        %s338 = scalar_select %p337, %s336, 7
        %s339 = smul.addr %s338, 8
        %s340 = scalar_lea.vmem %s7, %s339
        %s341 = smul.u32 2, %s22
        %v342 = vld [vmem:[%s2] sm:$0xff]
        %v343 = vld [vmem:[%s2 + $0x8] sm:$0xff]
        %v344 = vld [vmem:[%s2 + $0x10] sm:$0xff]
        %v345 = vld [vmem:[%s2 + $0x18] sm:$0xff]
        %v346 = vld [vmem:[%s2 + $0x20] sm:$0xff]
        %v347 = vld [vmem:[%s2 + $0x28] sm:$0xff]
        %v348 = vld [vmem:[%s2 + $0x30] sm:$0xff]
        %v349 = vld [vmem:[%s2 + $0x38] sm:$0xff]
        %v350 = vld [vmem:[%s333] sm:$0xff]
        %v351 = vld [vmem:[%s333 + $0x8] sm:$0xff]
        %vm352 = vcmask 523264
        %v354 = vsel %vm352, %v350, 0
        %v357 = vsel %vm352, %v351, 0
        %359 = vmatpush.msra.mxu0 0.0
        %360 = vmatpush.msra.mxu0 0.0
        %361 = vmatpush.msra.mxu0 0.0
        %362 = vmatpush.msra.mxu0 0.0
        %363 = vmatpush.msra.mxu0 0.0
        %364 = vmatpush.msra.mxu0 0.0
        %365 = vmatpush.msra.mxu0 0.0
        %366 = vmatpush.msra.mxu0 0.0
        %367 = vmatpush.msra.mxu0 %v349
        %368 = vmatpush.msra.mxu0 %v348
        %369 = vmatpush.msra.mxu0 %v347
        %370 = vmatpush.msra.mxu0 %v346
        %371 = vmatpush.msra.mxu0 %v345
        %372 = vmatpush.msra.mxu0 %v344
        %373 = vmatpush.msra.mxu0 %v343
        %374 = vmatpush.msra.mxu0 %v342
        %375 = vmatmul.f32.gmra.mxu0 %v354
        %v376 = vpop.f32.mrf.mxu0
        %v377 = vadd.f32 0.0, %v376
        %378 = vmatmul.f32.gmra.mxu0 %v357
        %v379 = vpop.f32.mrf.mxu0
        %v380 = vadd.f32 0.0, %v379
        %381 = vdwg.mxu0
        %v382 = vld [vmem:[%s287] sm:$0xff]
        %v383 = vld [vmem:[%s287 + $0x8] sm:$0xff]
        %v385 = vsel %vm352, %v382, 0
        %v388 = vsel %vm352, %v383, 0
        %390 = vmatpush.msra.mxu0 0.0
        %391 = vmatpush.msra.mxu0 0.0
        %392 = vmatpush.msra.mxu0 0.0
        %393 = vmatpush.msra.mxu0 0.0
        %394 = vmatpush.msra.mxu0 0.0
        %395 = vmatpush.msra.mxu0 0.0
        %396 = vmatpush.msra.mxu0 0.0
        %397 = vmatpush.msra.mxu0 0.0
        %398 = vmatpush.msra.mxu0 %v349
        %399 = vmatpush.msra.mxu0 %v348
        %400 = vmatpush.msra.mxu0 %v347
        %401 = vmatpush.msra.mxu0 %v346
        %402 = vmatpush.msra.mxu0 %v345
        %403 = vmatpush.msra.mxu0 %v344
        %404 = vmatpush.msra.mxu0 %v343
        %405 = vmatpush.msra.mxu0 %v342
        %406 = vmatmul.f32.gmra.mxu0 %v385
        %v407 = vpop.f32.mrf.mxu0
        %v408 = vadd.f32 0.0, %v407
        %409 = vmatmul.f32.gmra.mxu0 %v388
        %v410 = vpop.f32.mrf.mxu0
        %v411 = vadd.f32 0.0, %v410
        %412 = vdwg.mxu0
        %v413 = vld [vmem:[%s3] sm:$0xff]
        %v414 = vld [vmem:[%s3 + $0x8] sm:$0xff]
        %v415 = vld [vmem:[#allocation4] sm:$0xff]
        %v416 = vld [vmem:[#allocation4 + $0x8] sm:$0xff]
        %vm417 = vcmask 130048
        %v419 = vsel %vm417, %v408, 0
        %v422 = vsel %vm417, %v411, 0
        %424 = vmatpush.msra.mxu0 0.0
        %425 = vmatpush.msra.mxu0 0.0
        %426 = vmatpush.msra.mxu0 0.0
        %427 = vmatpush.msra.mxu0 0.0
        %428 = vmatpush.msra.mxu0 0.0
        %429 = vmatpush.msra.mxu0 0.0
        %430 = vmatpush.msra.mxu0 0.0
        %431 = vmatpush.msra.mxu0 0.0
        %432 = vmatpush.msra.mxu0 0.0
        %433 = vmatpush.msra.mxu0 0.0
        %434 = vmatpush.msra.mxu0 0.0
        %435 = vmatpush.msra.mxu0 0.0
        %436 = vmatpush.msra.mxu0 0.0
        %437 = vmatpush.msra.mxu0 0.0
        %438 = vmatpush.msra.mxu0 %v416
        %439 = vmatpush.msra.mxu0 %v415
        %440 = vmatmul.f32.gmra.mxu0 %v419
        %v441 = vpop.f32.mrf.mxu0
        %v442 = vadd.f32 0.0, %v441
        %443 = vmatmul.f32.gmra.mxu0 %v422
        %v444 = vpop.f32.mrf.mxu0
        %v445 = vadd.f32 0.0, %v444
        %446 = vdwg.mxu0
        %v448 = vsel %vm417, %v377, 0
        %v451 = vsel %vm417, %v380, 0
        %453 = vmatpush.msra.mxu0 0.0
        %454 = vmatpush.msra.mxu0 0.0
        %455 = vmatpush.msra.mxu0 0.0
        %456 = vmatpush.msra.mxu0 0.0
        %457 = vmatpush.msra.mxu0 0.0
        %458 = vmatpush.msra.mxu0 0.0
        %459 = vmatpush.msra.mxu0 0.0
        %460 = vmatpush.msra.mxu0 0.0
        %461 = vmatpush.msra.mxu0 0.0
        %462 = vmatpush.msra.mxu0 0.0
        %463 = vmatpush.msra.mxu0 0.0
        %464 = vmatpush.msra.mxu0 0.0
        %465 = vmatpush.msra.mxu0 0.0
        %466 = vmatpush.msra.mxu0 0.0
        %467 = vmatpush.msra.mxu0 %v414
        %468 = vmatpush.msra.mxu0 %v413
        %469 = vmatmul.f32.gmra.mxu0 %v448
        %v470 = vpop.f32.mrf.mxu0
        %v471 = vadd.f32 %v442, %v470
        %472 = vmatmul.f32.gmra.mxu0 %v451
        %v473 = vpop.f32.mrf.mxu0
        %v474 = vadd.f32 %v445, %v473
        %475 = vdwg.mxu0
        %v476 = vld [vmem:[%s4] sm:$0x1]
        %v478 = vperm.slane %v476, 0
        %v480 = vadd.f32 %v471, %v478
        %v481 = vadd.f32 %v474, %v478
        %v482 = vld [vmem:[%s6] sm:$0x1]
        %v484 = vperm.slane %v482, 0
        %v486 = vadd.f32 %v480, %v484
        %v487 = vadd.f32 %v481, %v484
        %v488 = vmul.f32 %v486, 0.5
        %v489 = vmul.f32 %v487, 0.5
        %v490 = vmul.f32 %v486, 0.70710677
        %v491 = vmul.f32 %v487, 0.70710677
        %vm492 = vcmp.ge.f32.partialorder %v490, 0.0
        %vm493 = vcmp.ge.f32.partialorder %v491, 0.0
        %v494 = vsel %vm492, 1.0, -1.0
        %v495 = vsel %vm493, 1.0, -1.0
        %v496 = vand.u32 2147483647, %v490
        %v497 = vand.u32 2147483647, %v491
        %v498 = vmul.f32 %v496, 0.3275911
        %v499 = vmul.f32 %v497, 0.3275911
        %v500 = vadd.f32 %v498, 1.0
        %v501 = vadd.f32 %v499, 1.0
        %v502 = vrcp.pop %v500
        %v503 = vmul.f32 %v500, %v502
        %v504 = vsub.f32 1.0, %v503
        %v505 = vmul.f32 %v502, %v504
        %v506 = vadd.f32 %v502, %v505
        %vm507 = vweird.f32 %v500
        %vm508 = vweird.f32 %v502
        %vm509 = vmor %vm507, %vm508
        %v510 = vsel %vm509, %v502, %v506
        %v511 = vand.u32 2147483647, %v500
        %vm512 = vcmp.eq.f32.partialorder %v511, 8.507059e+37
        %v513 = vand.u32 %v500, 2147483648
        %v514 = vor.u32 1.1754944e-38, %v513
        %v515 = vsel %vm512, %v514, %v510
        %v516 = vmul.f32 1.0, %v515
        %v517 = vrcp.pop %v501
        %v518 = vmul.f32 %v501, %v517
        %v519 = vsub.f32 1.0, %v518
        %v520 = vmul.f32 %v517, %v519
        %v521 = vadd.f32 %v517, %v520
        %vm522 = vweird.f32 %v501
        %vm523 = vweird.f32 %v517
        %vm524 = vmor %vm522, %vm523
        %v525 = vsel %vm524, %v517, %v521
        %v526 = vand.u32 2147483647, %v501
        %vm527 = vcmp.eq.f32.partialorder %v526, 8.507059e+37
        %v528 = vand.u32 %v501, 2147483648
        %v529 = vor.u32 1.1754944e-38, %v528
        %v530 = vsel %vm527, %v529, %v525
        %v531 = vmul.f32 1.0, %v530
        %v532 = vmul.f32 %v516, 1.0614054
        %v533 = vmul.f32 %v531, 1.0614054
        %v534 = vadd.f32 %v532, -1.4531521
        %v535 = vadd.f32 %v533, -1.4531521
        %v536 = vmul.f32 %v534, %v516
        %v537 = vmul.f32 %v535, %v531
        %v538 = vadd.f32 %v536, 1.4214138
        %v539 = vadd.f32 %v537, 1.4214138
        %v540 = vmul.f32 %v538, %v516
        %v541 = vmul.f32 %v539, %v531
        %v542 = vadd.f32 %v540, -0.28449672
        %v543 = vadd.f32 %v541, -0.28449672
        %v544 = vmul.f32 %v542, %v516
        %v545 = vmul.f32 %v543, %v531
        %v546 = vadd.f32 %v544, 0.2548296
        %v547 = vadd.f32 %v545, 0.2548296
        %v548 = vmul.f32 %v546, %v516
        %v549 = vmul.f32 %v547, %v531
        %v550 = vsub.f32 0.0, %v496
        %v551 = vsub.f32 0.0, %v497
        %v552 = vmul.f32 %v550, %v496
        %v553 = vmul.f32 %v551, %v497
        %v554 = vmul.f32 %v552, 1.442695
        %v555 = vpow.pop %v554
        %v556 = vmul.f32 %v553, 1.442695
        %v557 = vpow.pop %v556
        %v558 = vmul.f32 %v548, %v555
        %v559 = vmul.f32 %v549, %v557
        %v560 = vsub.f32 1.0, %v558
        %v561 = vsub.f32 1.0, %v559
        %v562 = vmul.f32 %v494, %v560
        %v563 = vmul.f32 %v495, %v561
        %v564 = vadd.f32 %v562, 1.0
        %v565 = vadd.f32 %v563, 1.0
        %v566 = vmul.f32 %v488, %v564
        %v567 = vmul.f32 %v489, %v565
        %vm568 = vcmask 261120
        %569 = vst.msk [vmem:[%s340] sm:$0xff] %vm568, %v566
        %570 = vst.msk [vmem:[%s340 + $0x8] sm:$0xff] %vm568, %v567
        %s571 = smul.u32 2, %s22
        %p572 = scmp.lt.s32.totalorder %s571, 7
        %s573 = scalar_select %p572, %s571, 7
        %s574 = smul.addr %s573, 8
        %s575 = scalar_lea.vmem %s7, %s574
        // Predicated region
        $region57: #{tpu_custom_call.1} parent=47 // pred_check
          %p576 = pneg %p197
        $region58: #{tpu_custom_call.1} parent=47 // pred_check_branch
          %578 = sbr.rel (%p576) target = $region60
        $region59: #{tpu_custom_call.1} parent=47 // pred_region
          %s579 = smul.u32 2, %s22
        $region60: #{tpu_custom_call.1} parent=47 // pred_fallthru
          _
      $region48: #{tpu_custom_call.1} parent=5 // pred_fallthru
        _
      %p580 = scmp.le.s32.totalorder 2, %s17
      // Predicated region
      $region61: #{tpu_custom_call.1} parent=5 // pred_check
        %p581 = pneg %p580
      $region62: #{tpu_custom_call.1} parent=5 // pred_check_branch
        %583 = sbr.rel (%p581) target = $region64
      $region63: #{tpu_custom_call.1} parent=5 // pred_region
        %s584 = ssub.s32 %s17, 2
        // Predicated region
        $region65: #{tpu_custom_call.1} parent=63 // pred_check
          %p585 = pneg %p203
        $region66: #{tpu_custom_call.1} parent=63 // pred_check_branch
          %587 = sbr.rel (%p585) target = $region68
        $region67: #{tpu_custom_call.1} parent=63 // pred_region
          %s588 = smul.u32 2, %s23
          %p589 = scmp.lt.s32.totalorder %s588, 7
          %s590 = scalar_select %p589, %s588, 7
          %s591 = smul.addr %s590, 8
          %s592 = scalar_lea.vmem %s7, %s591
        $region68: #{tpu_custom_call.1} parent=63 // pred_fallthru
          _
      $region64: #{tpu_custom_call.1} parent=5 // pred_fallthru
        _
    $region6: #{tpu_custom_call.1} parent=1 // loop_footer
      %s21 = sadd.s32 1, %s17
    $region7: #{tpu_custom_call.1} parent=1 // loop_footer_branch
      %16 = sbr.rel target = $region3
    $region8: #{tpu_custom_call.1} parent=1 // loop_exit
      _
    %593 = vsyncpa [#allocation3], 1
    %s594 = scalar_lea.sflag [#allocation3], 1
    %595 = vsyncpa %s594, 1
    %596 = vsyncpa [#allocation5], 1

</llo_original>
